<compile_context>
chip_gen: v7x
topology: tpu7x:2x2x1
jax: 0.10.0
libtpu: 0.0.40
codegen_flags: <defaults>
</compile_context>

<pallas_src>
import numpy as np
import jax
import jax.numpy as jnp
from jax.experimental import pallas as pl
from jax.experimental.pallas import tpu as pltpu


# ============================================================================
# Host-side (numpy) weight construction — glue, not the hot path.
# ============================================================================

def _bicubic_weight_matrix(in_size: int, out_size: int) -> np.ndarray:
    """Dense (out_size, in_size) bicubic sampling matrix matching
    torch.nn.functional.interpolate(mode='bicubic', align_corners=False,
    recompute_scale_factor=True)."""
    A = -0.75
    scale = in_size / out_size                      # recompute_scale_factor=True
    dst = np.arange(out_size, dtype=np.float64)
    real = scale * (dst + 0.5) - 0.5                # source coord (unclamped for cubic)
    in_idx = np.floor(real).astype(np.int64)
    t = real - in_idx

    def cc1(x):   # |x| <= 1
        return ((A + 2.0) * x - (A + 3.0)) * x * x + 1.0

    def cc2(x):   # 1 < |x| < 2
        return ((A * x - 5.0 * A) * x + 8.0 * A) * x - 4.0 * A

    coeffs = [cc2(t + 1.0), cc1(t), cc1(1.0 - t), cc2(2.0 - t)]
    W = np.zeros((out_size, in_size), dtype=np.float32)
    for k in range(4):
        idx = np.clip(in_idx - 1 + k, 0, in_size - 1)     # border replication
        for o in range(out_size):
            W[o, idx[o]] += coeffs[k][o]
    return W


def _round_up(a: int, b: int) -> int:
    return -(-a // b) * b


def _banded_row_weights(wh_dense: np.ndarray, tm: int, tk: int):
    """Exploit the 4-tap band structure of the bicubic row weights.

    For output-row tile i only a ~(tm*sf + 3)-row input band is needed.  Compact wh into
    (n_tiles, tm, n_kb*tk) where slot j holds the weights for input-row block
    kb_table[i*n_kb + j] (tk rows each).  Padding slots keep zero weights and point at a
    valid in-range block, so they contribute exactly 0."""
    out_h, H = wh_dense.shape
    n_tiles = -(-out_h // tm)
    H_pad = _round_up(H, tk)
    n_blocks = H_pad // tk

    ranges = []
    for i in range(n_tiles):
        rows = wh_dense[i * tm: min((i + 1) * tm, out_h)]
        nz = np.nonzero(np.any(rows != 0.0, axis=0))[0]
        ranges.append((int(nz.min()) // tk, int(nz.max()) // tk))
    n_kb = max(hi - lo + 1 for lo, hi in ranges)

    wh_banded = np.zeros((n_tiles, tm, n_kb * tk), dtype=np.float32)
    kb_table = np.zeros((n_tiles, n_kb), dtype=np.int32)
    for i, (lo_b, hi_b) in enumerate(ranges):
        rows = wh_dense[i * tm: min((i + 1) * tm, out_h)]
        for j in range(n_kb):
            kb = min(lo_b + j, n_blocks - 1)
            kb_table[i, j] = kb
            if lo_b + j <= hi_b:
                c0, c1 = kb * tk, min(kb * tk + tk, H)
                wh_banded[i, : rows.shape[0], j * tk: j * tk + (c1 - c0)] = rows[:, c0:c1]
    return wh_banded, kb_table.reshape(-1), n_kb, H_pad, n_tiles


def _vmem_limit_bytes() -> int:
    """Generation-aware VMEM budget (~0.7x physical), safe fallback."""
    try:
        info = pltpu.get_tpu_info()
        cap = getattr(info, "vmem_capacity_bytes", None)
        if cap:
            return int(0.7 * cap)
    except Exception:
        pass
    return 48 * 1024 * 1024   # fits v5e/v6e/v7x


# ============================================================================
# Kernels
# ============================================================================

def _dense_row_first_kernel(wh_ref, x_ref, wwt_ref, o_ref):
    # wh (outH,H) bf16 · x (H,W) bf16 -> f32, then (· wwt (W,outW) bf16) -> f32
    tmp = jnp.dot(wh_ref[...], x_ref[...], preferred_element_type=jnp.float32)
    out = jnp.dot(tmp.astype(jnp.bfloat16), wwt_ref[...],
                  preferred_element_type=jnp.float32)
    o_ref[...] = jnp.clip(out, 0.0, 255.0).astype(o_ref.dtype)


def _dense_col_first_kernel(wh_ref, x_ref, wwt_ref, o_ref):
    # Tall images (H > W): contract the tall dim second (fewer total FLOPs).
    tmp = jnp.dot(x_ref[...], wwt_ref[...], preferred_element_type=jnp.float32)
    out = jnp.dot(wh_ref[...], tmp.astype(jnp.bfloat16),
                  preferred_element_type=jnp.float32)
    o_ref[...] = jnp.clip(out, 0.0, 255.0).astype(o_ref.dtype)


def _banded_kernel(kb_tbl_ref, wh_ref, x_ref, wwt_ref, o_ref, acc_ref):
    # Grid = (C*n_tiles [parallel], n_kb [arbitrary / reduction]).
    # acc accumulates the row-interpolated tile (tm, W) in f32 across the K blocks.
    del kb_tbl_ref                      # only used by the index_maps
    j = pl.program_id(1)

    @pl.when(j == 0)
    def _():
        acc_ref[...] = jnp.zeros_like(acc_ref)

    acc_ref[...] += jnp.dot(wh_ref[...], x_ref[...],
                            preferred_element_type=jnp.float32)

    @pl.when(j == pl.num_programs(1) - 1)
    def _():
        out = jnp.dot(acc_ref[...].astype(jnp.bfloat16), wwt_ref[...],
                      preferred_element_type=jnp.float32)
        o_ref[...] = jnp.clip(out, 0.0, 255.0).astype(o_ref.dtype)


# ============================================================================
# Wrapper
# ============================================================================

def downsample(img: jax.Array, sf: int, *, tm: int = 256, tk: int = 256) -> jax.Array:
    """img: (C, H, W). Returns squeeze(clamp(bicubic_downsample(img, 1/sf), 0, 255))."""
    C, H, W = img.shape
    # recompute_scale_factor=True -> output size = floor(in * (1/sf))
    out_h = int(np.floor(H * (1.0 / sf)))
    out_w = int(np.floor(W * (1.0 / sf)))
    itemsize = jnp.dtype(img.dtype).itemsize
    vmem_limit = _vmem_limit_bytes()

    wh = _bicubic_weight_matrix(H, out_h)           # (outH, H)
    wwt = _bicubic_weight_matrix(W, out_w).T        # (W, outW)

    # Deliberate bf16 operand path (f32 accumulation via preferred_element_type).
    img_bf16 = img.astype(jnp.bfloat16)
    wwt_bf16 = jnp.asarray(wwt, dtype=jnp.bfloat16)

    n_row_tiles = -(-out_h // tm)
    # Dense-path per-step VMEM: x double-buffered + constant wh/wwt + out double-buffered.
    dense_step_vmem = (2 * H * W * 2 + out_h * H * 2 + W * out_w * 2
                       + 2 * out_h * out_w * itemsize)
    use_banded = (n_row_tiles > 1) or (dense_step_vmem > 24 * 1024 * 1024)

    if not use_banded:
        # ------------- small images: one dense two-matmul step per channel -------------
        # col-first only wins for tall images: row-first = 2*outH*W*(H+outW) FLOPs,
        # col-first = 2*H*outW*(W+outH).
        col_first = H > W
        kernel = _dense_col_first_kernel if col_first else _dense_row_first_kernel
        if col_first:
            flops = 2 * C * (H * W * out_w + out_h * H * out_w)
        else:
            flops = 2 * C * (out_h * H * W + out_h * W * out_w)
        bytes_accessed = (2 * C * H * W            # image (bf16), once per channel
                          + 2 * out_h * H          # wh (resident)
                          + 2 * W * out_w          # wwt (resident)
                          + itemsize * C * out_h * out_w)
        out = pl.pallas_call(
            kernel,
            out_shape=jax.ShapeDtypeStruct((C, out_h, out_w), img.dtype),
            grid_spec=pltpu.PrefetchScalarGridSpec(
                num_scalar_prefetch=0,
                grid=(C,),
                in_specs=[
                    # Constant weight blocks: single-buffer (double-buffering a block
                    # that never changes is dead VMEM).
                    pl.BlockSpec((out_h, H), lambda c: (0, 0),
                                 pipeline_mode=pl.Buffered(1)),
                    pl.BlockSpec((None, H, W), lambda c: (c, 0, 0)),
                    pl.BlockSpec((W, out_w), lambda c: (0, 0),
                                 pipeline_mode=pl.Buffered(1)),
                ],
                out_specs=pl.BlockSpec((None, out_h, out_w), lambda c: (c, 0, 0)),
            ),
            compiler_params=pltpu.CompilerParams(
                dimension_semantics=("parallel",),
                vmem_limit_bytes=vmem_limit,
            ),
            cost_estimate=pl.CostEstimate(flops=flops, transcendentals=0,
                                          bytes_accessed=bytes_accessed),
        )(jnp.asarray(wh, dtype=jnp.bfloat16), img_bf16, wwt_bf16)
        return jnp.squeeze(out)

    # ------------- large images: banded, row-tiled, K-block accumulating path ----------
    assert tm % 8 == 0 and tk % 128 == 0, "tm must be a multiple of 8, tk of 128"
    tm_eff = min(tm, _round_up(out_h, 8))
    wh_banded, kb_table_np, n_kb, H_pad, n_tiles = _banded_row_weights(wh, tm_eff, tk)

    # Zero-pad image rows to a multiple of tk so every K block the table can point at is
    # fully in-bounds (the bf16 cast already rewrites the image, so the pad is ~free).
    x_bf16 = img_bf16
    if H_pad != H:
        x_bf16 = jnp.pad(img_bf16, ((0, 0), (0, H_pad - H), (0, 0)))

    wh_banded_bf16 = jnp.asarray(wh_banded, dtype=jnp.bfloat16)
    kb_table = jnp.asarray(kb_table_np, dtype=jnp.int32)       # (n_tiles * n_kb,) SMEM

    flops = 2 * C * n_tiles * (tm_eff * (n_kb * tk) * W + tm_eff * W * out_w)
    bytes_accessed = (2 * C * n_tiles * n_kb * tk * W          # x band blocks (bf16)
                      + 2 * C * n_tiles * tm_eff * n_kb * tk   # wh_banded per (c, i)
                      + 2 * W * out_w                          # wwt (resident)
                      + itemsize * C * out_h * out_w)

    out = pl.pallas_call(
        _banded_kernel,
        out_shape=jax.ShapeDtypeStruct((C, out_h, out_w), img.dtype),
        grid_spec=pltpu.PrefetchScalarGridSpec(
            num_scalar_prefetch=1,
            # Flattened (channel x row-tile) parallel axis -> balanced 2-TC megacore
            # sharding on v7x even when C == 3; K-block (reduction) axis last.
            grid=(C * n_tiles, n_kb),
            in_specs=[
                pl.BlockSpec((None, tm_eff, tk),
                             lambda t, j, tbl: (t % n_tiles, 0, j)),
                pl.BlockSpec((None, tk, W),
                             lambda t, j, tbl: (t // n_tiles,
                                                tbl[(t % n_tiles) * n_kb + j], 0)),
                pl.BlockSpec((W, out_w), lambda t, j, tbl: (0, 0),
                             pipeline_mode=pl.Buffered(1)),        # constant weights
            ],
            out_specs=pl.BlockSpec((None, tm_eff, out_w),
                                   lambda t, j, tbl: (t // n_tiles, t % n_tiles, 0)),
            scratch_shapes=[pltpu.VMEM((tm_eff, W), jnp.float32)],
        ),
        compiler_params=pltpu.CompilerParams(
            dimension_semantics=("parallel", "arbitrary"),
            vmem_limit_bytes=vmem_limit,
        ),
        cost_estimate=pl.CostEstimate(flops=flops, transcendentals=0,
                                      bytes_accessed=bytes_accessed),
    )(kb_table, wh_banded_bf16, x_bf16, wwt_bf16)

    # torch.squeeze removes all size-1 dims (including the added batch dim).
    return jnp.squeeze(out)


# ============================================================================
# Self-check
# ============================================================================

def _reference(img_np: np.ndarray, sf: int) -> np.ndarray:
    C, H, W = img_np.shape
    out_h = int(np.floor(H * (1.0 / sf)))
    out_w = int(np.floor(W * (1.0 / sf)))
    wh = _bicubic_weight_matrix(H, out_h).astype(np.float64)
    wwt = _bicubic_weight_matrix(W, out_w).astype(np.float64).T
    out = np.einsum("oh,chw,wp->cop", wh, img_np.astype(np.float64), wwt)
    return np.squeeze(np.clip(out, 0.0, 255.0)).astype(np.float32)


if __name__ == "__main__":
    key = jax.random.PRNGKey(0)

    # Small image -> dense single-step-per-channel path.
    C, H, W, sf = 4, 16, 16, 2
    img = jax.random.uniform(key, (C, H, W), dtype=jnp.float32,
                             minval=0.0, maxval=255.0)
    out = downsample(img, sf)
    jax.block_until_ready(out)
    ref = _reference(np.asarray(img, dtype=np.float32), sf)
    assert out.shape == (C, H // sf, W // sf), out.shape
    assert float(jnp.min(out)) >= 0.0 and float(jnp.max(out)) <= 255.0
    assert float(np.max(np.abs(np.asarray(out, dtype=np.float32) - ref))) < 4.0

    # Modest image with small tile overrides -> exercises the banded, row-tiled,
    # K-block accumulating path (the production large-image path).
    C2, H2, W2, sf2 = 2, 256, 256, 2
    img2 = jax.random.uniform(jax.random.PRNGKey(0), (C2, H2, W2),
                              dtype=jnp.float32, minval=0.0, maxval=255.0)
    out2 = downsample(img2, sf2, tm=32, tk=128)
    jax.block_until_ready(out2)
    ref2 = _reference(np.asarray(img2, dtype=np.float32), sf2)
    assert out2.shape == (C2, H2 // sf2, W2 // sf2), out2.shape
    assert float(np.max(np.abs(np.asarray(out2, dtype=np.float32) - ref2))) < 4.0

    print("KERNEL_OK")
</pallas_src>

<mosaic_0001>
module attributes {stable_mosaic.version = 11 : i64} {
  func.func @_dense_row_first_kernel(%arg0: i32, %arg1: memref<8x16xbf16, #tpu.memory_space<vmem>>, %arg2: memref<1x16x16xbf16, #tpu.memory_space<vmem>>, %arg3: memref<16x8xbf16, #tpu.memory_space<vmem>>, %arg4: memref<1x8x8xf32, #tpu.memory_space<vmem>>) attributes {dimension_semantics = [#tpu.dimension_semantics<parallel>], iteration_bounds = array<i64: 4>, scalar_prefetch = 0 : i64, scratch_operands = 0 : i64, tpu.core_type = #tpu.core_type<tc>, window_params = [{pipeline_mode = #tpu.pipeline_mode<synchronous>, transform_indices = @transform_0, window_bounds = array<i64: 8, 16>}, {transform_indices = @transform_1, window_bounds = array<i64: 1, 16, 16>}, {pipeline_mode = #tpu.pipeline_mode<synchronous>, transform_indices = @transform_2, window_bounds = array<i64: 16, 8>}, {transform_indices = @transform_3, window_bounds = array<i64: 1, 8, 8>}]} {
    %c0 = arith.constant 0 : index
    %c0_0 = arith.constant 0 : index
    %0 = vector.load %arg1[%c0, %c0_0] : memref<8x16xbf16, #tpu.memory_space<vmem>>, vector<8x16xbf16>
    %c0_1 = arith.constant 0 : index
    %c0_2 = arith.constant 0 : index
    %c0_3 = arith.constant 0 : index
    %1 = vector.load %arg2[%c0_1, %c0_2, %c0_3] : memref<1x16x16xbf16, #tpu.memory_space<vmem>>, vector<1x16x16xbf16>
    %2 = vector.shape_cast %1 : vector<1x16x16xbf16> to vector<16x16xbf16>
    %cst = arith.constant dense<0.000000e+00> : vector<8x16xf32>
    %3 = tpu.matmul %0, %2, %cst {dimension_numbers = #tpu.dot_dimension_numbers<[1], [0], [0], [1], [0, 0, 1, 1], [], []>} : vector<8x16xbf16>, vector<16x16xbf16>, vector<8x16xf32> -> vector<8x16xf32>
    %4 = arith.truncf %3 : vector<8x16xf32> to vector<8x16xbf16>
    %c0_4 = arith.constant 0 : index
    %c0_5 = arith.constant 0 : index
    %5 = vector.load %arg3[%c0_4, %c0_5] : memref<16x8xbf16, #tpu.memory_space<vmem>>, vector<16x8xbf16>
    %cst_6 = arith.constant dense<0.000000e+00> : vector<8x8xf32>
    %6 = tpu.matmul %4, %5, %cst_6 {dimension_numbers = #tpu.dot_dimension_numbers<[1], [0], [0], [1], [0, 0, 1, 1], [], []>} : vector<8x16xbf16>, vector<16x8xbf16>, vector<8x8xf32> -> vector<8x8xf32>
    %cst_7 = arith.constant 0.000000e+00 : f32
    %cst_8 = arith.constant 2.550000e+02 : f32
    %7 = vector.broadcast %cst_7 : f32 to vector<8x8xf32>
    %8 = arith.maximumf %7, %6 : vector<8x8xf32>
    %9 = vector.broadcast %cst_8 : f32 to vector<8x8xf32>
    %10 = arith.minimumf %9, %8 : vector<8x8xf32>
    %c0_9 = arith.constant 0 : index
    %c0_10 = arith.constant 0 : index
    %c0_11 = arith.constant 0 : index
    %11 = vector.load %arg4[%c0_9, %c0_10, %c0_11] : memref<1x8x8xf32, #tpu.memory_space<vmem>>, vector<1x8x8xf32>
    %12 = vector.shape_cast %11 : vector<1x8x8xf32> to vector<8x8xf32>
    %13 = vector.shape_cast %10 : vector<8x8xf32> to vector<1x8x8xf32>
    tpu.vector_store %arg4[%c0_9, %c0_10, %c0_11], %13 {strides = array<i32>} : memref<1x8x8xf32, #tpu.memory_space<vmem>>, vector<1x8x8xf32>,
    return
  }
  func.func @transform_0(%arg0: i32) -> (i32, i32) {
    %c0_i32 = arith.constant 0 : i32
    %c0_i32_0 = arith.constant 0 : i32
    %c0_i32_1 = arith.constant 0 : i32
    return %c0_i32, %c0_i32_0 : i32, i32
  }
  func.func @transform_1(%arg0: i32) -> (i32, i32, i32) {
    %c0_i32 = arith.constant 0 : i32
    %c0_i32_0 = arith.constant 0 : i32
    %c0_i32_1 = arith.constant 0 : i32
    return %arg0, %c0_i32, %c0_i32_0 : i32, i32, i32
  }
  func.func @transform_2(%arg0: i32) -> (i32, i32) {
    %c0_i32 = arith.constant 0 : i32
    %c0_i32_0 = arith.constant 0 : i32
    %c0_i32_1 = arith.constant 0 : i32
    return %c0_i32, %c0_i32_0 : i32, i32
  }
  func.func @transform_3(%arg0: i32) -> (i32, i32, i32) {
    %c0_i32 = arith.constant 0 : i32
    %c0_i32_0 = arith.constant 0 : i32
    %c0_i32_1 = arith.constant 0 : i32
    return %arg0, %c0_i32, %c0_i32_0 : i32, i32, i32
  }
}

</mosaic_0001>

<llo_original>
// kernel: tpu_custom_call.1
$region0: #{tpu_custom_call.1}
  #allocation0 [shape = 'u32[]', space=smem, size = 0x4, offset = 0x4, fixed_abs, tag = 'smem constant byte address 0x4 - core index']
  #allocation1 [shape = 'u32[144,128]{1,0:T(1,128)}', space=vmem, size = 0x12000, scoped, tag = 'internal scratch']
  %s0 = inlined_call_operand.vmem [shape: bf16[8,16], index: 0, kind: input, shape index: {}]
  %s1 = inlined_call_operand.hbm [shape: bf16[4,16,16], index: 1, kind: input, shape index: {}]
  %s2 = inlined_call_operand.vmem [shape: bf16[16,8], index: 2, kind: input, shape index: {}]
  %s3 = inlined_call_operand.hbm [shape: f32[4,8,8], index: 3, kind: output, shape index: {}]
  %s4 = sld [smem:[#allocation0]]
  $region49: #{tpu_custom_call.1} parent=0
    _
  %s6 = ssub.s32 1, %s4
  %s7 = scalar_select 0, %s6, %s4
  $region1: #{tpu_custom_call.1} parent=0
    #allocation2 [shape = 'u8[8192]{0}', space=vmem, size = 0x2000, scoped, tag = 'input window, operand 1']
    #allocation3 [shape = 's32[2]{0}', space=sflag, size = 0x8, scoped, tag = 'scoped memory for tpu_custom_call.1']
    #allocation4 [shape = 's32[2]{0}', space=sflag, size = 0x8, scoped, tag = 'scoped memory for tpu_custom_call.1']
    #allocation5 [shape = 'u8[8192]{0}', space=vmem, size = 0x2000, scoped, tag = 'output window, operand 0']
    %8 = vsyncpa [#allocation3], 0
    %s9 = scalar_lea.sflag [#allocation3], 1
    %10 = vsyncpa %s9, 0
    %11 = vsyncpa [#allocation4], 0
    %s12 = scalar_lea.sflag [#allocation4], 1
    %13 = vsyncpa %s12, 0
    loop: start=0, step=1, limit=6
    $region2: #{tpu_custom_call.1} parent=1 // loop_pre_header
      _
    $region3: #{tpu_custom_call.1} parent=1 // loop_header
      %s15 = sphi 0, %s19
      %p16 = scmp.ge.s32.totalorder %s15, 6
      %s23 = sphi 0, %s23
      %s25 = sphi 0, %s23
      %s26 = sphi 0, %s25
      %s40 = sphi 0, %s26
      %s46 = sphi 0, %s48
      %s49 = sphi 0, %s46
      %s50 = sphi 0, %s49
      %s66 = sphi 0, %s50
      %s70 = sphi 0, %s70
      %s72 = sphi 0, %s70
      %s73 = sphi 0, %s72
      %s87 = sphi 0, %s73
      %s93 = sphi 0, %s95
      %s96 = sphi 0, %s93
      %s97 = sphi 0, %s96
      %s113 = sphi 0, %s97
    $region4: #{tpu_custom_call.1} parent=1 // loop_header_branch
      %18 = sbr.rel (%p16) target = $region8
    $region5: #{tpu_custom_call.1} parent=1 // loop_body
      %s20 = ssub.s32 %s15, 1
      %s21 = ssub.s32 %s15, 2
      %s22 = sadd.s32 %s15, 1
      %s24 = sadd.s32 %s23, 1
      %p27 = scmp.eq.s32.totalorder %s15, 3
      %p28 = scmp.ne.s32.totalorder %s23, %s25
      %p29 = scmp.eq.s32.totalorder %s15, 0
      %p30 = por %p28, %p29
      %p31 = scmp.ne.s32.totalorder %s23, %s25
      %p32 = scmp.eq.s32.totalorder %s20, 3
      %p33 = por %p31, %p32
      %p34 = scmp.ne.s32.totalorder %s25, %s26
      %p35 = scmp.eq.s32.totalorder %s20, 0
      %p36 = por %p34, %p35
      %p37 = scmp.ne.s32.totalorder %s25, %s26
      %p38 = scmp.eq.s32.totalorder %s21, 3
      %p39 = por %p37, %p38
      %p41 = scmp.ne.s32.totalorder %s26, %s40
      %p42 = scmp.eq.s32.totalorder %s21, 0
      %p43 = por %p41, %p42
      %s44 = ssub.s32 %s15, %s22
      %p45 = scmp.eq.s32.totalorder %s44, 0
      %s47 = sadd.s32 %s46, 1
      %s48 = scalar_select %p45, %s46, %s47
      %p51 = pneg %p45
      %p52 = scmp.eq.s32.totalorder %s15, 3
      %p53 = por %p51, %p52
      %p54 = scmp.ne.s32.totalorder %s46, %s49
      %p55 = scmp.eq.s32.totalorder %s15, 0
      %p56 = por %p54, %p55
      %p57 = scmp.ne.s32.totalorder %s46, %s49
      %p58 = scmp.eq.s32.totalorder %s20, 3
      %p59 = por %p57, %p58
      %p60 = scmp.ne.s32.totalorder %s49, %s50
      %p61 = scmp.eq.s32.totalorder %s20, 0
      %p62 = por %p60, %p61
      %p63 = scmp.ne.s32.totalorder %s49, %s50
      %p64 = scmp.eq.s32.totalorder %s21, 3
      %p65 = por %p63, %p64
      %p67 = scmp.ne.s32.totalorder %s50, %s66
      %p68 = scmp.eq.s32.totalorder %s21, 0
      %p69 = por %p67, %p68
      %s71 = sadd.s32 %s70, 1
      %p74 = scmp.eq.s32.totalorder %s15, 3
      %p75 = scmp.ne.s32.totalorder %s70, %s72
      %p76 = scmp.eq.s32.totalorder %s15, 0
      %p77 = por %p75, %p76
      %p78 = scmp.ne.s32.totalorder %s70, %s72
      %p79 = scmp.eq.s32.totalorder %s20, 3
      %p80 = por %p78, %p79
      %p81 = scmp.ne.s32.totalorder %s72, %s73
      %p82 = scmp.eq.s32.totalorder %s20, 0
      %p83 = por %p81, %p82
      %p84 = scmp.ne.s32.totalorder %s72, %s73
      %p85 = scmp.eq.s32.totalorder %s21, 3
      %p86 = por %p84, %p85
      %p88 = scmp.ne.s32.totalorder %s73, %s87
      %p89 = scmp.eq.s32.totalorder %s21, 0
      %p90 = por %p88, %p89
      %s91 = ssub.s32 %s15, %s22
      %p92 = scmp.eq.s32.totalorder %s91, 0
      %s94 = sadd.s32 %s93, 1
      %s95 = scalar_select %p92, %s93, %s94
      %p98 = pneg %p92
      %p99 = scmp.eq.s32.totalorder %s15, 3
      %p100 = por %p98, %p99
      %p101 = scmp.ne.s32.totalorder %s93, %s96
      %p102 = scmp.eq.s32.totalorder %s15, 0
      %p103 = por %p101, %p102
      %p104 = scmp.ne.s32.totalorder %s93, %s96
      %p105 = scmp.eq.s32.totalorder %s20, 3
      %p106 = por %p104, %p105
      %p107 = scmp.ne.s32.totalorder %s96, %s97
      %p108 = scmp.eq.s32.totalorder %s20, 0
      %p109 = por %p107, %p108
      %p110 = scmp.ne.s32.totalorder %s96, %s97
      %p111 = scmp.eq.s32.totalorder %s21, 3
      %p112 = por %p110, %p111
      %p114 = scmp.ne.s32.totalorder %s97, %s113
      %p115 = scmp.eq.s32.totalorder %s21, 0
      %p116 = por %p114, %p115
      %p117 = scmp.le.s32.totalorder 1, %s15
      %p118 = scmp.lt.s32.totalorder %s15, 5
      %p119 = pnand %p117, %p118
      %p120 = pneg %p119
      // Predicated region
      $region9: #{tpu_custom_call.1} parent=5 // pred_check
        _
      $region10: #{tpu_custom_call.1} parent=5 // pred_check_branch
        %122 = sbr.rel (%p119) target = $region12
      $region11: #{tpu_custom_call.1} parent=5 // pred_region
        %s123 = ssub.s32 %s15, 1
        // Predicated region
        $region13: #{tpu_custom_call.1} parent=11 // pred_check
          %p124 = pneg %p36
        $region14: #{tpu_custom_call.1} parent=11 // pred_check_branch
          %126 = sbr.rel (%p124) target = $region16
        $region15: #{tpu_custom_call.1} parent=11 // pred_region
          _
        $region16: #{tpu_custom_call.1} parent=11 // pred_fallthru
          _
        // Predicated region
        $region17: #{tpu_custom_call.1} parent=11 // pred_check
          %p127 = pneg %p83
        $region18: #{tpu_custom_call.1} parent=11 // pred_check_branch
          %129 = sbr.rel (%p127) target = $region20
        $region19: #{tpu_custom_call.1} parent=11 // pred_region
          _
        $region20: #{tpu_custom_call.1} parent=11 // pred_fallthru
          _
      $region12: #{tpu_custom_call.1} parent=5 // pred_fallthru
        _
      %p130 = scmp.lt.s32.totalorder %s15, 4
      // Predicated region
      $region21: #{tpu_custom_call.1} parent=5 // pred_check
        %p131 = pneg %p130
      $region22: #{tpu_custom_call.1} parent=5 // pred_check_branch
        %133 = sbr.rel (%p131) target = $region24
      $region23: #{tpu_custom_call.1} parent=5 // pred_region
        // Predicated region
        $region25: #{tpu_custom_call.1} parent=23 // pred_check
          %p134 = pneg %p56
        $region26: #{tpu_custom_call.1} parent=23 // pred_check_branch
          %136 = sbr.rel (%p134) target = $region28
        $region27: #{tpu_custom_call.1} parent=23 // pred_region
          %s137 = sand.u32 %s46, 1
          %s138 = scalar_lea.sflag [#allocation3], %s137
          %s139 = sand.u32 %s46, 1
          %s140 = smul.addr %s139, 8
          %s141 = scalar_lea.vmem [#allocation2], %s140
          %s143 = ssub.s32 128, 128
          %144 = vsyncadd %s138, %s143
          %s145 = smul.addr %s15, 2
          %s146 = smul.addr %s145, 64
          %s147 = scalar_lea.hbm %s1, %s146
          %s148 = sshll.u32 %s141, 4
          %s149 = int_to_ptr.vmem [resolvable:$true] %s148
          %154 = dma.hbm_to_vmem [thread:$0]  %s147, 128, %s149, %s138, 64, 64, 4
        $region28: #{tpu_custom_call.1} parent=23 // pred_fallthru
          _
      $region24: #{tpu_custom_call.1} parent=5 // pred_fallthru
        _
      %p155 = scmp.le.s32.totalorder 1, %s15
      %p156 = scmp.lt.s32.totalorder %s15, 5
      %p157 = pnand %p155, %p156
      %p158 = pneg %p157
      // Predicated region
      $region29: #{tpu_custom_call.1} parent=5 // pred_check
        _
      $region30: #{tpu_custom_call.1} parent=5 // pred_check_branch
        %160 = sbr.rel (%p157) target = $region32
      $region31: #{tpu_custom_call.1} parent=5 // pred_region
        %s161 = ssub.s32 %s15, 1
        %s162 = sand.u32 %s49, 1
        %s163 = scalar_lea.sflag [#allocation3], %s162
        %s164 = sand.u32 %s49, 1
        %s165 = smul.addr %s164, 8
        %s166 = scalar_lea.vmem [#allocation2], %s165
        // Predicated region
        $region33: #{tpu_custom_call.1} parent=31 // pred_check
          %p167 = pneg %p62
        $region34: #{tpu_custom_call.1} parent=31 // pred_check_branch
          %169 = sbr.rel (%p167) target = $region36
        $region35: #{tpu_custom_call.1} parent=31 // pred_region
          %170 = dma.done %s163, 128
        $region36: #{tpu_custom_call.1} parent=31 // pred_fallthru
          _
        %p171 = pneg %p36
        %p172 = pneg %p33
        %s173 = sand.u32 %s49, 1
        %s174 = scalar_lea.sflag [#allocation3], %s173
        %s175 = sand.u32 %s49, 1
        %s176 = smul.addr %s175, 8
        %s177 = scalar_lea.vmem [#allocation2], %s176
        %p178 = pneg %p62
        %p179 = pneg %p59
        %p180 = pneg %p83
        %p181 = pneg %p80
        %p182 = pneg %p109
        %p183 = pneg %p106
        %s184 = sand.u32 %s96, 1
        %s185 = scalar_lea.sflag [#allocation4], %s184
        %s186 = sand.u32 %s96, 1
        %s187 = smul.addr %s186, 8
        %s188 = scalar_lea.vmem [#allocation5], %s187
        %v190 = vld [vmem:[%s0] sm:$0xf]
        %v191 = vld [vmem:[%s166] sm:$0xf]
        %v192 = vld [vmem:[%s166 + $0x4] sm:$0xf]
        %v195 = vunpack.c.l.b16 %v191
        %v196 = vunpack.c.l.b16 %v192
        %v197 = vpack.c.b16 %v196, %v195
        %vm199 = vcmask 130048
        %v201 = vsel %vm199, %v190, 0
        %203 = vmatprep.subr.bf16.mxu0 0
        %204 = vmatpush1.bf16.msra.mxu0 %v197
        %205 = vmatprep.subr.bf16.mxu0 0
        %206 = vmatpush1.bf16.msra.mxu0 0
        %207 = vmatprep.subr.bf16.mxu0 0
        %208 = vmatpush1.bf16.msra.mxu0 0
        %209 = vmatprep.subr.bf16.mxu0 0
        %210 = vmatpush1.bf16.msra.mxu0 0
        %211 = vmatprep.subr.bf16.mxu0 0
        %212 = vmatpush1.bf16.msra.mxu0 0
        %213 = vmatprep.subr.bf16.mxu0 0
        %214 = vmatpush1.bf16.msra.mxu0 0
        %215 = vmatprep.subr.bf16.mxu0 0
        %216 = vmatpush1.bf16.msra.mxu0 0
        %217 = vmatprep.subr.bf16.mxu0 0
        %218 = vmatpush1.bf16.msra.mxu0 0
        %219 = vmatprep.subr.bf16.mxu0 0
        %220 = vmatpush1.bf16.msra.mxu0 0
        %221 = vmatprep.subr.bf16.mxu0 0
        %222 = vmatpush1.bf16.msra.mxu0 0
        %223 = vmatprep.subr.bf16.mxu0 0
        %224 = vmatpush1.bf16.msra.mxu0 0
        %225 = vmatprep.subr.bf16.mxu0 0
        %226 = vmatpush1.bf16.msra.mxu0 0
        %227 = vmatprep.subr.bf16.mxu0 0
        %228 = vmatpush1.bf16.msra.mxu0 0
        %229 = vmatprep.subr.bf16.mxu0 0
        %230 = vmatpush1.bf16.msra.mxu0 0
        %231 = vmatprep.subr.bf16.mxu0 0
        %232 = vmatpush1.bf16.msra.mxu0 0
        %233 = vmatprep.subr.bf16.mxu0 0
        %234 = vmatpush1.bf16.msra.mxu0 0
        %235 = vmatprep.mubr.bf16.mxu0 0
        %236 = vmatmul.mubr.bf16.gmra.mrb[0].mxu0 %v201
        %v237 = vpop.f32.mrb[0].mxu0
        %v238 = vadd.f32 0.0, %v237
        %v239 = vpop.f32.mrb[0].mxu0
        %v240 = vpop.f32.mrb[0].mxu0
        %v241 = vpop.f32.mrb[0].mxu0
        %242 = vdwg.mxu0
        %v243 = vpack.c.bf16 %v238, %v238
        %v244 = vld [vmem:[%s2] sm:$0xf]
        %v245 = vld [vmem:[%s2 + $0x4] sm:$0xf]
        %v248 = vunpack.c.l.b16 %v244
        %v249 = vunpack.c.l.b16 %v245
        %v250 = vpack.c.b16 %v249, %v248
        %v253 = vsel %vm199, %v243, 0
        %255 = vmatprep.subr.bf16.mxu0 0
        %256 = vmatpush1.bf16.msra.mxu0 %v250
        %257 = vmatprep.subr.bf16.mxu0 0
        %258 = vmatpush1.bf16.msra.mxu0 0
        %259 = vmatprep.subr.bf16.mxu0 0
        %260 = vmatpush1.bf16.msra.mxu0 0
        %261 = vmatprep.subr.bf16.mxu0 0
        %262 = vmatpush1.bf16.msra.mxu0 0
        %263 = vmatprep.subr.bf16.mxu0 0
        %264 = vmatpush1.bf16.msra.mxu0 0
        %265 = vmatprep.subr.bf16.mxu0 0
        %266 = vmatpush1.bf16.msra.mxu0 0
        %267 = vmatprep.subr.bf16.mxu0 0
        %268 = vmatpush1.bf16.msra.mxu0 0
        %269 = vmatprep.subr.bf16.mxu0 0
        %270 = vmatpush1.bf16.msra.mxu0 0
        %271 = vmatprep.subr.bf16.mxu0 0
        %272 = vmatpush1.bf16.msra.mxu0 0
        %273 = vmatprep.subr.bf16.mxu0 0
        %274 = vmatpush1.bf16.msra.mxu0 0
        %275 = vmatprep.subr.bf16.mxu0 0
        %276 = vmatpush1.bf16.msra.mxu0 0
        %277 = vmatprep.subr.bf16.mxu0 0
        %278 = vmatpush1.bf16.msra.mxu0 0
        %279 = vmatprep.subr.bf16.mxu0 0
        %280 = vmatpush1.bf16.msra.mxu0 0
        %281 = vmatprep.subr.bf16.mxu0 0
        %282 = vmatpush1.bf16.msra.mxu0 0
        %283 = vmatprep.subr.bf16.mxu0 0
        %284 = vmatpush1.bf16.msra.mxu0 0
        %285 = vmatprep.subr.bf16.mxu0 0
        %286 = vmatpush1.bf16.msra.mxu0 0
        %287 = vmatprep.mubr.bf16.mxu0 0
        %288 = vmatmul.mubr.bf16.gmra.mrb[0].mxu0 %v253
        %v289 = vpop.f32.mrb[0].mxu0
        %v290 = vadd.f32 0.0, %v289
        %v291 = vpop.f32.mrb[0].mxu0
        %v292 = vpop.f32.mrb[0].mxu0
        %v293 = vpop.f32.mrb[0].mxu0
        %294 = vdwg.mxu0
        %v295 = vmax.f32 %v290, 0.0
        %v296 = vmin.f32 %v295, 255.0
        %vm297 = vcmask 64512
        %298 = vst.msk [vmem:[%s188] sm:$0xff] %vm297, %v296
        %s299 = sand.u32 %s96, 1
        %s300 = scalar_lea.sflag [#allocation4], %s299
        %s301 = sand.u32 %s96, 1
        %s302 = smul.addr %s301, 8
        %s303 = scalar_lea.vmem [#allocation5], %s302
        // Predicated region
        $region37: #{tpu_custom_call.1} parent=31 // pred_check
          %p304 = pneg %p106
        $region38: #{tpu_custom_call.1} parent=31 // pred_check_branch
          %306 = sbr.rel (%p304) target = $region40
        $region39: #{tpu_custom_call.1} parent=31 // pred_region
          %s308 = ssub.s32 128, 128
          %309 = vsyncadd %s300, %s308
          %s310 = smul.addr %s20, 128
          %s311 = scalar_lea.hbm %s3, %s310
          %s313 = sshll.u32 %s303, 4
          %s314 = int_to_ptr.vmem [resolvable:$true] %s313
          %316 = dma.vmem_to_hbm [thread:$0]  %s314, 128, %s311, %s300
        $region40: #{tpu_custom_call.1} parent=31 // pred_fallthru
          _
      $region32: #{tpu_custom_call.1} parent=5 // pred_fallthru
        _
      %p317 = scmp.le.s32.totalorder 2, %s15
      // Predicated region
      $region41: #{tpu_custom_call.1} parent=5 // pred_check
        %p318 = pneg %p317
      $region42: #{tpu_custom_call.1} parent=5 // pred_check_branch
        %320 = sbr.rel (%p318) target = $region44
      $region43: #{tpu_custom_call.1} parent=5 // pred_region
        %s321 = ssub.s32 %s15, 2
        // Predicated region
        $region45: #{tpu_custom_call.1} parent=43 // pred_check
          %p322 = pneg %p112
        $region46: #{tpu_custom_call.1} parent=43 // pred_check_branch
          %324 = sbr.rel (%p322) target = $region48
        $region47: #{tpu_custom_call.1} parent=43 // pred_region
          %s325 = sand.u32 %s97, 1
          %s326 = scalar_lea.sflag [#allocation4], %s325
          %s327 = sand.u32 %s97, 1
          %s328 = smul.addr %s327, 8
          %s329 = scalar_lea.vmem [#allocation5], %s328
          %330 = dma.done %s326, 128
        $region48: #{tpu_custom_call.1} parent=43 // pred_fallthru
          _
      $region44: #{tpu_custom_call.1} parent=5 // pred_fallthru
        _
    $region6: #{tpu_custom_call.1} parent=1 // loop_footer
      %s19 = sadd.s32 1, %s15
    $region7: #{tpu_custom_call.1} parent=1 // loop_footer_branch
      %14 = sbr.rel target = $region3
    $region8: #{tpu_custom_call.1} parent=1 // loop_exit
      _
    %331 = vsyncpa [#allocation3], 1
    %s332 = scalar_lea.sflag [#allocation3], 1
    %333 = vsyncpa %s332, 1
    %334 = vsyncpa [#allocation4], 1
    %s335 = scalar_lea.sflag [#allocation4], 1
    %336 = vsyncpa %s335, 1

</llo_original>
